<compile_context>
chip_gen: v5e
topology: v5e:2x2
jax: 0.10.0
libtpu: 0.0.40
codegen_flags: <defaults>
</compile_context>

<pallas_src>
import numpy as np
import jax
import jax.numpy as jnp
from jax.experimental import pallas as pl
from jax.experimental.pallas import tpu as pltpu

CIN, COUT, GROUPS = 12, 9, 3
K, STRIDE, PADDING = 7, 2, 1
CIG, COG = CIN // GROUPS, COUT // GROUPS
LANE = 128
TM_MAX = 512  # batch-row tile for large N


def _out_hw(h, w):
    return ((h - 1) * STRIDE - 2 * PADDING + K,
            (w - 1) * STRIDE - 2 * PADDING + K)


def _padded_q(oh, ow):
    return ((oh * ow + LANE - 1) // LANE) * LANE


def fold_weights(w_t, h, w):
    """One-time weight folding (setup, NOT in the per-call path).

    w_t: (CIN, COUT//GROUPS, K, K) — PyTorch ConvTranspose2d weight layout.
    Returns MT: (GROUPS, CIG*h*w, COG*q_pad) float32 such that, per group g,
      y[n, g*COG + co, oh, ow] =
        (x[n, g*CIG:(g+1)*CIG].reshape(-1) @ MT[g])[co*q_pad + oh*OW + ow]
    i.e. the grouped transposed conv as GROUPS dense matmuls, with each output
    channel's spatial block zero-padded from OH*OW up to a lane multiple.
    Only the exact (non-zero) per-group blocks are stored — no cross-group
    zero fill — which is what cuts the weight DMA 3x.
    """
    oh, ow = _out_hw(h, w)
    q_pad = _padded_q(oh, ow)
    wt = np.asarray(w_t, np.float32)                                   # (CIN, COG, K, K)

    # Equivalent stride-1 conv weight: flip spatially, swap in/out channel
    # roles within each group.  Keep the per-group block structure.
    w_flip = wt[:, :, ::-1, ::-1]                                      # (CIN, COG, K, K)
    w_g = np.transpose(w_flip.reshape(GROUPS, CIG, COG, K, K),
                       (0, 2, 1, 3, 4))                                # (G, COG, CIG, K, K)

    # Gather into the folded per-group linear maps.  With xpad = zero-insert
    # (STRIDE) + pad(K-1-PADDING) of x, the transposed conv is
    #   y[co, oh, ow] = sum_{ci,kh,kw} w[co,ci,kh,kw] * xpad[ci, oh+kh, ow+kw]
    # and xpad[ci, a, b] = x[ci, ih, iw] iff a = pe + ih*STRIDE, b = pe + iw*STRIDE.
    pe = K - 1 - PADDING
    kh = pe + np.arange(h)[None, :] * STRIDE - np.arange(oh)[:, None]  # (OH, H)
    kw = pe + np.arange(w)[None, :] * STRIDE - np.arange(ow)[:, None]  # (OW, W)
    vh = (kh >= 0) & (kh < K)
    vw = (kw >= 0) & (kw < K)
    khc = np.clip(kh, 0, K - 1)
    kwc = np.clip(kw, 0, K - 1)
    m = w_g[:, :, :, khc[:, :, None, None], kwc[None, None, :, :]]     # (G,COG,CIG,OH,H,OW,W)
    m = m * (vh[:, :, None, None] & vw[None, None, :, :])
    m = m.transpose(0, 1, 3, 5, 2, 4, 6).reshape(GROUPS, COG, oh * ow, CIG * h * w)
    m = np.pad(m, ((0, 0), (0, 0), (0, q_pad - oh * ow), (0, 0)))      # lane-dense q axis
    mt = np.ascontiguousarray(
        m.reshape(GROUPS, COG * q_pad, CIG * h * w).transpose(0, 2, 1))  # (G, CIG*H*W, COG*q_pad)
    return jnp.asarray(mt)


def _make_kernel(kin, qg):
    """kin = CIG*H*W input columns per group; qg = COG*q_pad output lanes per group."""
    def kernel(x_ref, mt_ref, o_ref):
        xv = x_ref[...]                                  # (tm, GROUPS*kin)
        for g in range(GROUPS):                          # unrolled: 3 MXU dots
            # qg is a multiple of 128 -> each store is lane-aligned/unmasked.
            o_ref[:, g * qg:(g + 1) * qg] = jnp.tanh(
                jnp.dot(xv[:, g * kin:(g + 1) * kin], mt_ref[g],
                        preferred_element_type=jnp.float32))
    return kernel


@jax.jit
def conv_transpose_tanh(x, mt):
    """x: (N, CIN, H, W) float32 (NCHW, like PyTorch); mt: from fold_weights.
    Returns tanh(conv_transpose2d(x)) of shape (N, COUT, OH, OW)."""
    n, _, h, w = x.shape
    oh, ow = _out_hw(h, w)
    q_pad = _padded_q(oh, ow)
    kin = CIG * h * w
    qg = COG * q_pad

    x_flat = x.reshape(n, CIN * h * w)                   # leading-dim flatten only
    if x_flat.dtype != jnp.float32:
        x_flat = x_flat.astype(jnp.float32)

    # Batch-row grid: single step for small N, pipelined + (v7x) core-parallel
    # for large N.  Weight block has a constant index_map -> stays resident.
    tm = n if n <= TM_MAX else TM_MAX
    grid = (pl.cdiv(n, tm),)

    cost = pl.CostEstimate(
        flops=2 * n * kin * qg * GROUPS,
        transcendentals=n * COUT * q_pad,
        bytes_accessed=(x_flat.size + mt.size + n * COUT * q_pad) * 4,
    )

    y = pl.pallas_call(
        _make_kernel(kin, qg),
        out_shape=jax.ShapeDtypeStruct((n, COUT * q_pad), jnp.float32),
        grid=grid,
        in_specs=[pl.BlockSpec((tm, CIN * h * w), lambda i: (i, 0)),
                  pl.BlockSpec((GROUPS, kin, qg), lambda i: (0, 0, 0))],
        out_specs=pl.BlockSpec((tm, COUT * q_pad), lambda i: (i, 0)),
        compiler_params=pltpu.CompilerParams(dimension_semantics=("parallel",)),
        cost_estimate=cost,
    )(x_flat, mt)

    # Crop the lane-padding and restore the module's (N, COUT, OH, OW) layout.
    return y.reshape(n, COUT, q_pad)[:, :, :oh * ow].reshape(n, COUT, oh, ow)


def ref_forward(x, w_t):
    # Independent reference: lax dilated conv expressing the transposed conv,
    # at full precision so the 1e-4 check is against a real f32 baseline.
    w_flip = w_t[:, :, ::-1, ::-1]
    w_conv = jnp.transpose(
        w_flip.reshape(GROUPS, CIG, COG, K, K), (0, 2, 1, 3, 4)
    ).reshape(COUT, CIG, K, K)
    pe = K - 1 - PADDING
    y = jax.lax.conv_general_dilated(
        x, w_conv, window_strides=(1, 1), padding=[(pe, pe), (pe, pe)],
        lhs_dilation=(STRIDE, STRIDE),
        dimension_numbers=('NCHW', 'OIHW', 'NCHW'),
        feature_group_count=GROUPS,
        precision=jax.lax.Precision.HIGHEST)
    return jnp.tanh(y)


if __name__ == "__main__":
    key = jax.random.PRNGKey(0)
    kx, kw = jax.random.split(key)
    # same input shape as the PyTorch script: x1 = torch.randn(1, 12, 4, 4)
    x = jax.random.normal(kx, (1, CIN, 4, 4), jnp.float32)
    # deterministic synthetic weight in PyTorch ConvTranspose2d layout
    w_t = jax.random.normal(kw, (CIN, COG, K, K), jnp.float32) * 0.1

    mt = fold_weights(w_t, 4, 4)          # one-time setup (weights are static)

    out = jax.block_until_ready(conv_transpose_tanh(x, mt))
    assert out.shape == (1, COUT, 11, 11), out.shape
    assert jnp.allclose(out, ref_forward(x, w_t), atol=1e-4, rtol=1e-4)

    # batched path: batch folds into the matmul row dimension, still one launch
    xb = jax.random.normal(jax.random.PRNGKey(1), (3, CIN, 4, 4), jnp.float32)
    outb = jax.block_until_ready(conv_transpose_tanh(xb, mt))
    assert outb.shape == (3, COUT, 11, 11), outb.shape
    assert jnp.allclose(outb, ref_forward(xb, w_t), atol=1e-4, rtol=1e-4)

    print("KERNEL_OK")
</pallas_src>

<mosaic_0001>
module attributes {stable_mosaic.version = 11 : i64} {
  func.func @kernel(%arg0: i32, %arg1: memref<1x192xf32, #tpu.memory_space<vmem>>, %arg2: memref<3x64x384xf32, #tpu.memory_space<vmem>>, %arg3: memref<1x1152xf32, #tpu.memory_space<vmem>>) attributes {dimension_semantics = [#tpu.dimension_semantics<parallel>], iteration_bounds = array<i64: 1>, scalar_prefetch = 0 : i64, scratch_operands = 0 : i64, tpu.core_type = #tpu.core_type<tc>, window_params = [{transform_indices = @transform_0, window_bounds = array<i64: 1, 192>}, {pipeline_mode = #tpu.pipeline_mode<synchronous>, transform_indices = @transform_1, window_bounds = array<i64: 3, 64, 384>}, {transform_indices = @transform_2, window_bounds = array<i64: 1, 1152>}]} {
    %c0 = arith.constant 0 : index
    %c0_0 = arith.constant 0 : index
    %0 = vector.load %arg1[%c0, %c0_0] : memref<1x192xf32, #tpu.memory_space<vmem>>, vector<1x192xf32>
    %1 = vector.extract_strided_slice %0 {offsets = [0, 0], sizes = [1, 64], strides = [1, 1]} : vector<1x192xf32> to vector<1x64xf32>
    %c0_1 = arith.constant 0 : index
    %c0_2 = arith.constant 0 : index
    %c0_3 = arith.constant 0 : index
    %2 = vector.load %arg2[%c0_1, %c0_2, %c0_3] : memref<3x64x384xf32, #tpu.memory_space<vmem>>, vector<1x64x384xf32>
    %3 = vector.shape_cast %2 : vector<1x64x384xf32> to vector<64x384xf32>
    %cst = arith.constant dense<0.000000e+00> : vector<1x384xf32>
    %4 = tpu.matmul %1, %3, %cst {dimension_numbers = #tpu.dot_dimension_numbers<[1], [0], [0], [1], [0, 0, 1, 1], [], []>} : vector<1x64xf32>, vector<64x384xf32>, vector<1x384xf32> -> vector<1x384xf32>
    %5 = math.tanh %4 : vector<1x384xf32>
    %c0_4 = arith.constant 0 : index
    %c0_5 = arith.constant 0 : index
    %6 = vector.load %arg3[%c0_4, %c0_5] : memref<1x1152xf32, #tpu.memory_space<vmem>>, vector<1x384xf32>
    tpu.vector_store %arg3[%c0_4, %c0_5], %5 {strides = array<i32>} : memref<1x1152xf32, #tpu.memory_space<vmem>>, vector<1x384xf32>,
    %7 = vector.extract_strided_slice %0 {offsets = [0, 64], sizes = [1, 64], strides = [1, 1]} : vector<1x192xf32> to vector<1x64xf32>
    %c1 = arith.constant 1 : index
    %c0_6 = arith.constant 0 : index
    %c0_7 = arith.constant 0 : index
    %8 = vector.load %arg2[%c1, %c0_6, %c0_7] : memref<3x64x384xf32, #tpu.memory_space<vmem>>, vector<1x64x384xf32>
    %9 = vector.shape_cast %8 : vector<1x64x384xf32> to vector<64x384xf32>
    %cst_8 = arith.constant dense<0.000000e+00> : vector<1x384xf32>
    %10 = tpu.matmul %7, %9, %cst_8 {dimension_numbers = #tpu.dot_dimension_numbers<[1], [0], [0], [1], [0, 0, 1, 1], [], []>} : vector<1x64xf32>, vector<64x384xf32>, vector<1x384xf32> -> vector<1x384xf32>
    %11 = math.tanh %10 : vector<1x384xf32>
    %c0_9 = arith.constant 0 : index
    %c384 = arith.constant 384 : index
    %12 = vector.load %arg3[%c0_9, %c384] : memref<1x1152xf32, #tpu.memory_space<vmem>>, vector<1x384xf32>
    tpu.vector_store %arg3[%c0_9, %c384], %11 {strides = array<i32>} : memref<1x1152xf32, #tpu.memory_space<vmem>>, vector<1x384xf32>,
    %13 = vector.extract_strided_slice %0 {offsets = [0, 128], sizes = [1, 64], strides = [1, 1]} : vector<1x192xf32> to vector<1x64xf32>
    %c2 = arith.constant 2 : index
    %c0_10 = arith.constant 0 : index
    %c0_11 = arith.constant 0 : index
    %14 = vector.load %arg2[%c2, %c0_10, %c0_11] : memref<3x64x384xf32, #tpu.memory_space<vmem>>, vector<1x64x384xf32>
    %15 = vector.shape_cast %14 : vector<1x64x384xf32> to vector<64x384xf32>
    %cst_12 = arith.constant dense<0.000000e+00> : vector<1x384xf32>
    %16 = tpu.matmul %13, %15, %cst_12 {dimension_numbers = #tpu.dot_dimension_numbers<[1], [0], [0], [1], [0, 0, 1, 1], [], []>} : vector<1x64xf32>, vector<64x384xf32>, vector<1x384xf32> -> vector<1x384xf32>
    %17 = math.tanh %16 : vector<1x384xf32>
    %c0_13 = arith.constant 0 : index
    %c768 = arith.constant 768 : index
    %18 = vector.load %arg3[%c0_13, %c768] : memref<1x1152xf32, #tpu.memory_space<vmem>>, vector<1x384xf32>
    tpu.vector_store %arg3[%c0_13, %c768], %17 {strides = array<i32>} : memref<1x1152xf32, #tpu.memory_space<vmem>>, vector<1x384xf32>,
    return
  }
  func.func @transform_0(%arg0: i32) -> (i32, i32) {
    %c0_i32 = arith.constant 0 : i32
    %c0_i32_0 = arith.constant 0 : i32
    return %arg0, %c0_i32 : i32, i32
  }
  func.func @transform_1(%arg0: i32) -> (i32, i32, i32) {
    %c0_i32 = arith.constant 0 : i32
    %c0_i32_0 = arith.constant 0 : i32
    %c0_i32_1 = arith.constant 0 : i32
    %c0_i32_2 = arith.constant 0 : i32
    return %c0_i32, %c0_i32_0, %c0_i32_1 : i32, i32, i32
  }
  func.func @transform_2(%arg0: i32) -> (i32, i32) {
    %c0_i32 = arith.constant 0 : i32
    %c0_i32_0 = arith.constant 0 : i32
    return %arg0, %c0_i32 : i32, i32
  }
}

</mosaic_0001>

<llo_original>
// kernel: conv_transpose_tanh.1
$region0: #{conv_transpose_tanh.1}
  #allocation0 [shape = 'u32[]', space=smem, size = 0x4, offset = 0x4, fixed_abs, tag = 'smem constant byte address 0x4 - core index']
  #allocation1 [shape = 'u32[72,128]{1,0:T(1,128)}', space=vmem, size = 0x9000, scoped, tag = 'internal scratch']
  %s0 = inlined_call_operand.vmem [shape: f32[1,192], index: 0, kind: input, shape index: {}]
  %s1 = inlined_call_operand.hbm [shape: f32[3,64,384], index: 1, kind: input, shape index: {}]
  %s2 = inlined_call_operand.vmem [shape: f32[1,1152], index: 2, kind: output, shape index: {}]
  %s3 = sld [smem:[#allocation0]]
  $region22: #{conv_transpose_tanh.1} parent=0
    _
  %s5 = ssub.s32 1, %s3
  %s6 = scalar_select 0, %s5, %s3
  $region1: #{conv_transpose_tanh.1} parent=0
    #allocation2 [shape = 'u8[294912]{0}', space=vmem, size = 0x48000, scoped, tag = 'input window, operand 1, single buffered']
    #allocation3 [shape = 's32[1]{0}', space=sflag, size = 0x4, scoped, tag = 'scoped memory for conv_transpose_tanh.1']
    %7 = vsyncpa [#allocation3], 0
    // Predicated region
    $region2: #{conv_transpose_tanh.1} parent=1 // pred_check
      _
    $region3: #{conv_transpose_tanh.1} parent=1 // pred_check_branch
      %9 = sbr.rel (0) target = $region5
    $region4: #{conv_transpose_tanh.1} parent=1 // pred_region
      _
    $region5: #{conv_transpose_tanh.1} parent=1 // pred_fallthru
      _
    // Predicated region
    $region6: #{conv_transpose_tanh.1} parent=1 // pred_check
      _
    $region7: #{conv_transpose_tanh.1} parent=1 // pred_check_branch
      %11 = sbr.rel (0) target = $region9
    $region8: #{conv_transpose_tanh.1} parent=1 // pred_region
      %13 = vsyncadd [#allocation3], 0
      %s14 = sshll.u32 %s1, 4
      %s15 = int_to_ptr.hbm [resolvable:$true] %s14
      %s16 = sshll.u32 [#allocation2], 4
      %s17 = int_to_ptr.vmem [resolvable:$true] %s16
      %22 = dma.hbm_to_vmem [thread:$0]  %s15, 9216, %s17, [#allocation3], 384, 384, 24
    $region9: #{conv_transpose_tanh.1} parent=1 // pred_fallthru
      _
    // Predicated region
    $region10: #{conv_transpose_tanh.1} parent=1 // pred_check
      _
    $region11: #{conv_transpose_tanh.1} parent=1 // pred_check_branch
      %24 = sbr.rel (0) target = $region13
    $region12: #{conv_transpose_tanh.1} parent=1 // pred_region
      %26 = dma.done [#allocation3], 9216
    $region13: #{conv_transpose_tanh.1} parent=1 // pred_fallthru
      _
    %v27 = vld [vmem:[%s0] sm:$0x3]
    %v28 = vld [vmem:[#allocation2] sm:$0xff]
    %v29 = vld [vmem:[#allocation2 + $0x8] sm:$0xff]
    %v30 = vld [vmem:[#allocation2 + $0x10] sm:$0xff]
    %v31 = vld [vmem:[#allocation2 + $0x18] sm:$0xff]
    %v32 = vld [vmem:[#allocation2 + $0x20] sm:$0xff]
    %v33 = vld [vmem:[#allocation2 + $0x28] sm:$0xff]
    %v34 = vld [vmem:[#allocation2 + $0x30] sm:$0xff]
    %v35 = vld [vmem:[#allocation2 + $0x38] sm:$0xff]
    %v36 = vld [vmem:[#allocation2 + $0x40] sm:$0xff]
    %v37 = vld [vmem:[#allocation2 + $0x48] sm:$0xff]
    %v38 = vld [vmem:[#allocation2 + $0x50] sm:$0xff]
    %v39 = vld [vmem:[#allocation2 + $0x58] sm:$0xff]
    %v40 = vld [vmem:[#allocation2 + $0x60] sm:$0xff]
    %v41 = vld [vmem:[#allocation2 + $0x68] sm:$0xff]
    %v42 = vld [vmem:[#allocation2 + $0x70] sm:$0xff]
    %v43 = vld [vmem:[#allocation2 + $0x78] sm:$0xff]
    %v44 = vld [vmem:[#allocation2 + $0x80] sm:$0xff]
    %v45 = vld [vmem:[#allocation2 + $0x88] sm:$0xff]
    %v46 = vld [vmem:[#allocation2 + $0x90] sm:$0xff]
    %v47 = vld [vmem:[#allocation2 + $0x98] sm:$0xff]
    %v48 = vld [vmem:[#allocation2 + $0xa0] sm:$0xff]
    %v49 = vld [vmem:[#allocation2 + $0xa8] sm:$0xff]
    %v50 = vld [vmem:[#allocation2 + $0xb0] sm:$0xff]
    %v51 = vld [vmem:[#allocation2 + $0xb8] sm:$0xff]
    %vm52 = vcmask 523264
    %v54 = vsel %vm52, %v27, 0
    %56 = vmatpush.msra.mxu0 0.0
    %57 = vmatpush.msra.mxu0 0.0
    %58 = vmatpush.msra.mxu0 0.0
    %59 = vmatpush.msra.mxu0 0.0
    %60 = vmatpush.msra.mxu0 0.0
    %61 = vmatpush.msra.mxu0 0.0
    %62 = vmatpush.msra.mxu0 0.0
    %63 = vmatpush.msra.mxu0 0.0
    %64 = vmatpush.msra.mxu0 %v49
    %65 = vmatpush.msra.mxu0 %v46
    %66 = vmatpush.msra.mxu0 %v43
    %67 = vmatpush.msra.mxu0 %v40
    %68 = vmatpush.msra.mxu0 %v37
    %69 = vmatpush.msra.mxu0 %v34
    %70 = vmatpush.msra.mxu0 %v31
    %71 = vmatpush.msra.mxu0 %v28
    %72 = vmatmul.f32.gmra.mxu0 %v54
    %v73 = vpop.f32.mrf.mxu0
    %v74 = vadd.f32 0.0, %v73
    %75 = vdwg.mxu0
    %76 = vmatpush.msra.mxu0 0.0
    %77 = vmatpush.msra.mxu0 0.0
    %78 = vmatpush.msra.mxu0 0.0
    %79 = vmatpush.msra.mxu0 0.0
    %80 = vmatpush.msra.mxu0 0.0
    %81 = vmatpush.msra.mxu0 0.0
    %82 = vmatpush.msra.mxu0 0.0
    %83 = vmatpush.msra.mxu0 0.0
    %84 = vmatpush.msra.mxu0 %v50
    %85 = vmatpush.msra.mxu0 %v47
    %86 = vmatpush.msra.mxu0 %v44
    %87 = vmatpush.msra.mxu0 %v41
    %88 = vmatpush.msra.mxu0 %v38
    %89 = vmatpush.msra.mxu0 %v35
    %90 = vmatpush.msra.mxu0 %v32
    %91 = vmatpush.msra.mxu0 %v29
    %92 = vmatmul.f32.gmra.mxu0 %v54
    %v93 = vpop.f32.mrf.mxu0
    %v94 = vadd.f32 0.0, %v93
    %95 = vdwg.mxu0
    %96 = vmatpush.msra.mxu0 0.0
    %97 = vmatpush.msra.mxu0 0.0
    %98 = vmatpush.msra.mxu0 0.0
    %99 = vmatpush.msra.mxu0 0.0
    %100 = vmatpush.msra.mxu0 0.0
    %101 = vmatpush.msra.mxu0 0.0
    %102 = vmatpush.msra.mxu0 0.0
    %103 = vmatpush.msra.mxu0 0.0
    %104 = vmatpush.msra.mxu0 %v51
    %105 = vmatpush.msra.mxu0 %v48
    %106 = vmatpush.msra.mxu0 %v45
    %107 = vmatpush.msra.mxu0 %v42
    %108 = vmatpush.msra.mxu0 %v39
    %109 = vmatpush.msra.mxu0 %v36
    %110 = vmatpush.msra.mxu0 %v33
    %111 = vmatpush.msra.mxu0 %v30
    %112 = vmatmul.f32.gmra.mxu0 %v54
    %v113 = vpop.f32.mrf.mxu0
    %v114 = vadd.f32 0.0, %v113
    %115 = vdwg.mxu0
    %v116 = vtanh.pop %v74
    %v117 = vtanh.pop %v94
    %v118 = vtanh.pop %v114
    %v122 = vrot.slane %v117, 7
    %v123 = vrot.slane %v118, 6
    %vm124 = vcmask 1040384
    %v125 = vsel %vm124, %v116, %v122
    %vm126 = vcmask 1041408
    %v127 = vsel %vm126, %v125, %v123
    %v129 = vlaneseq
    %vm130 = vcmp.ge.s32.totalorder %v129, 0
    %vm131 = vcmp.lt.s32.totalorder %v129, 384
    %vm132 = vmand %vm130, %vm131
    %133 = vst.msk [vmem:[%s2] sm:$0x7] %vm132, %v127
    %s134 = scalar_lea.vmem [#allocation2], 192
    %v135 = vld [vmem:[%s134] sm:$0xff]
    %v136 = vld [vmem:[%s134 + $0x8] sm:$0xff]
    %v137 = vld [vmem:[%s134 + $0x10] sm:$0xff]
    %v138 = vld [vmem:[%s134 + $0x18] sm:$0xff]
    %v139 = vld [vmem:[%s134 + $0x20] sm:$0xff]
    %v140 = vld [vmem:[%s134 + $0x28] sm:$0xff]
    %v141 = vld [vmem:[%s134 + $0x30] sm:$0xff]
    %v142 = vld [vmem:[%s134 + $0x38] sm:$0xff]
    %v143 = vld [vmem:[%s134 + $0x40] sm:$0xff]
    %v144 = vld [vmem:[%s134 + $0x48] sm:$0xff]
    %v145 = vld [vmem:[%s134 + $0x50] sm:$0xff]
    %v146 = vld [vmem:[%s134 + $0x58] sm:$0xff]
    %v147 = vld [vmem:[%s134 + $0x60] sm:$0xff]
    %v148 = vld [vmem:[%s134 + $0x68] sm:$0xff]
    %v149 = vld [vmem:[%s134 + $0x70] sm:$0xff]
    %v150 = vld [vmem:[%s134 + $0x78] sm:$0xff]
    %v151 = vld [vmem:[%s134 + $0x80] sm:$0xff]
    %v152 = vld [vmem:[%s134 + $0x88] sm:$0xff]
    %v153 = vld [vmem:[%s134 + $0x90] sm:$0xff]
    %v154 = vld [vmem:[%s134 + $0x98] sm:$0xff]
    %v155 = vld [vmem:[%s134 + $0xa0] sm:$0xff]
    %v156 = vld [vmem:[%s134 + $0xa8] sm:$0xff]
    %v157 = vld [vmem:[%s134 + $0xb0] sm:$0xff]
    %v158 = vld [vmem:[%s134 + $0xb8] sm:$0xff]
    %v159 = vperm.slane %v27, 0
    %160 = vrot.lane.b32.xlu0 %v159, 64
    %v161 = vpop.permute.xlu0 %160
    %v162 = vsel %vm52, %v161, 0
    %164 = vmatpush.msra.mxu0 0.0
    %165 = vmatpush.msra.mxu0 0.0
    %166 = vmatpush.msra.mxu0 0.0
    %167 = vmatpush.msra.mxu0 0.0
    %168 = vmatpush.msra.mxu0 0.0
    %169 = vmatpush.msra.mxu0 0.0
    %170 = vmatpush.msra.mxu0 0.0
    %171 = vmatpush.msra.mxu0 0.0
    %172 = vmatpush.msra.mxu0 %v156
    %173 = vmatpush.msra.mxu0 %v153
    %174 = vmatpush.msra.mxu0 %v150
    %175 = vmatpush.msra.mxu0 %v147
    %176 = vmatpush.msra.mxu0 %v144
    %177 = vmatpush.msra.mxu0 %v141
    %178 = vmatpush.msra.mxu0 %v138
    %179 = vmatpush.msra.mxu0 %v135
    %180 = vmatmul.f32.gmra.mxu0 %v162
    %v181 = vpop.f32.mrf.mxu0
    %v182 = vadd.f32 0.0, %v181
    %183 = vdwg.mxu0
    %184 = vmatpush.msra.mxu0 0.0
    %185 = vmatpush.msra.mxu0 0.0
    %186 = vmatpush.msra.mxu0 0.0
    %187 = vmatpush.msra.mxu0 0.0
    %188 = vmatpush.msra.mxu0 0.0
    %189 = vmatpush.msra.mxu0 0.0
    %190 = vmatpush.msra.mxu0 0.0
    %191 = vmatpush.msra.mxu0 0.0
    %192 = vmatpush.msra.mxu0 %v157
    %193 = vmatpush.msra.mxu0 %v154
    %194 = vmatpush.msra.mxu0 %v151
    %195 = vmatpush.msra.mxu0 %v148
    %196 = vmatpush.msra.mxu0 %v145
    %197 = vmatpush.msra.mxu0 %v142
    %198 = vmatpush.msra.mxu0 %v139
    %199 = vmatpush.msra.mxu0 %v136
    %200 = vmatmul.f32.gmra.mxu0 %v162
    %v201 = vpop.f32.mrf.mxu0
    %v202 = vadd.f32 0.0, %v201
    %203 = vdwg.mxu0
    %204 = vmatpush.msra.mxu0 0.0
    %205 = vmatpush.msra.mxu0 0.0
    %206 = vmatpush.msra.mxu0 0.0
    %207 = vmatpush.msra.mxu0 0.0
    %208 = vmatpush.msra.mxu0 0.0
    %209 = vmatpush.msra.mxu0 0.0
    %210 = vmatpush.msra.mxu0 0.0
    %211 = vmatpush.msra.mxu0 0.0
    %212 = vmatpush.msra.mxu0 %v158
    %213 = vmatpush.msra.mxu0 %v155
    %214 = vmatpush.msra.mxu0 %v152
    %215 = vmatpush.msra.mxu0 %v149
    %216 = vmatpush.msra.mxu0 %v146
    %217 = vmatpush.msra.mxu0 %v143
    %218 = vmatpush.msra.mxu0 %v140
    %219 = vmatpush.msra.mxu0 %v137
    %220 = vmatmul.f32.gmra.mxu0 %v162
    %v221 = vpop.f32.mrf.mxu0
    %v222 = vadd.f32 0.0, %v221
    %223 = vdwg.mxu0
    %v224 = vtanh.pop %v182
    %v225 = vtanh.pop %v202
    %v226 = vtanh.pop %v222
    %v230 = vrot.slane %v225, 7
    %v231 = vrot.slane %v226, 6
    %v232 = vsel %vm124, %v224, %v230
    %v233 = vsel %vm126, %v232, %v231
    %235 = vst.msk [vmem:[%s2 + $0x3] sm:$0x7] %vm132, %v233
    %s236 = scalar_lea.vmem [#allocation2], 384
    %v237 = vld [vmem:[%s236] sm:$0xff]
    %v238 = vld [vmem:[%s236 + $0x8] sm:$0xff]
    %v239 = vld [vmem:[%s236 + $0x10] sm:$0xff]
    %v240 = vld [vmem:[%s236 + $0x18] sm:$0xff]
    %v241 = vld [vmem:[%s236 + $0x20] sm:$0xff]
    %v242 = vld [vmem:[%s236 + $0x28] sm:$0xff]
    %v243 = vld [vmem:[%s236 + $0x30] sm:$0xff]
    %v244 = vld [vmem:[%s236 + $0x38] sm:$0xff]
    %v245 = vld [vmem:[%s236 + $0x40] sm:$0xff]
    %v246 = vld [vmem:[%s236 + $0x48] sm:$0xff]
    %v247 = vld [vmem:[%s236 + $0x50] sm:$0xff]
    %v248 = vld [vmem:[%s236 + $0x58] sm:$0xff]
    %v249 = vld [vmem:[%s236 + $0x60] sm:$0xff]
    %v250 = vld [vmem:[%s236 + $0x68] sm:$0xff]
    %v251 = vld [vmem:[%s236 + $0x70] sm:$0xff]
    %v252 = vld [vmem:[%s236 + $0x78] sm:$0xff]
    %v253 = vld [vmem:[%s236 + $0x80] sm:$0xff]
    %v254 = vld [vmem:[%s236 + $0x88] sm:$0xff]
    %v255 = vld [vmem:[%s236 + $0x90] sm:$0xff]
    %v256 = vld [vmem:[%s236 + $0x98] sm:$0xff]
    %v257 = vld [vmem:[%s236 + $0xa0] sm:$0xff]
    %v258 = vld [vmem:[%s236 + $0xa8] sm:$0xff]
    %v259 = vld [vmem:[%s236 + $0xb0] sm:$0xff]
    %v260 = vld [vmem:[%s236 + $0xb8] sm:$0xff]
    %v261 = vperm.slane %v27, 1
    %v262 = vsel %vm52, %v261, 0
    %264 = vmatpush.msra.mxu0 0.0
    %265 = vmatpush.msra.mxu0 0.0
    %266 = vmatpush.msra.mxu0 0.0
    %267 = vmatpush.msra.mxu0 0.0
    %268 = vmatpush.msra.mxu0 0.0
    %269 = vmatpush.msra.mxu0 0.0
    %270 = vmatpush.msra.mxu0 0.0
    %271 = vmatpush.msra.mxu0 0.0
    %272 = vmatpush.msra.mxu0 %v258
    %273 = vmatpush.msra.mxu0 %v255
    %274 = vmatpush.msra.mxu0 %v252
    %275 = vmatpush.msra.mxu0 %v249
    %276 = vmatpush.msra.mxu0 %v246
    %277 = vmatpush.msra.mxu0 %v243
    %278 = vmatpush.msra.mxu0 %v240
    %279 = vmatpush.msra.mxu0 %v237
    %280 = vmatmul.f32.gmra.mxu0 %v262
    %v281 = vpop.f32.mrf.mxu0
    %v282 = vadd.f32 0.0, %v281
    %283 = vdwg.mxu0
    %284 = vmatpush.msra.mxu0 0.0
    %285 = vmatpush.msra.mxu0 0.0
    %286 = vmatpush.msra.mxu0 0.0
    %287 = vmatpush.msra.mxu0 0.0
    %288 = vmatpush.msra.mxu0 0.0
    %289 = vmatpush.msra.mxu0 0.0
    %290 = vmatpush.msra.mxu0 0.0
    %291 = vmatpush.msra.mxu0 0.0
    %292 = vmatpush.msra.mxu0 %v259
    %293 = vmatpush.msra.mxu0 %v256
    %294 = vmatpush.msra.mxu0 %v253
    %295 = vmatpush.msra.mxu0 %v250
    %296 = vmatpush.msra.mxu0 %v247
    %297 = vmatpush.msra.mxu0 %v244
    %298 = vmatpush.msra.mxu0 %v241
    %299 = vmatpush.msra.mxu0 %v238
    %300 = vmatmul.f32.gmra.mxu0 %v262
    %v301 = vpop.f32.mrf.mxu0
    %v302 = vadd.f32 0.0, %v301
    %303 = vdwg.mxu0
    %304 = vmatpush.msra.mxu0 0.0
    %305 = vmatpush.msra.mxu0 0.0
    %306 = vmatpush.msra.mxu0 0.0
    %307 = vmatpush.msra.mxu0 0.0
    %308 = vmatpush.msra.mxu0 0.0
    %309 = vmatpush.msra.mxu0 0.0
    %310 = vmatpush.msra.mxu0 0.0
    %311 = vmatpush.msra.mxu0 0.0
    %312 = vmatpush.msra.mxu0 %v260
    %313 = vmatpush.msra.mxu0 %v257
    %314 = vmatpush.msra.mxu0 %v254
    %315 = vmatpush.msra.mxu0 %v251
    %316 = vmatpush.msra.mxu0 %v248
    %317 = vmatpush.msra.mxu0 %v245
    %318 = vmatpush.msra.mxu0 %v242
    %319 = vmatpush.msra.mxu0 %v239
    %320 = vmatmul.f32.gmra.mxu0 %v262
    %v321 = vpop.f32.mrf.mxu0
    %v322 = vadd.f32 0.0, %v321
    %323 = vdwg.mxu0
    %v324 = vtanh.pop %v282
    %v325 = vtanh.pop %v302
    %v326 = vtanh.pop %v322
    %v330 = vrot.slane %v325, 7
    %v331 = vrot.slane %v326, 6
    %v332 = vsel %vm124, %v324, %v330
    %v333 = vsel %vm126, %v332, %v331
    %335 = vst.msk [vmem:[%s2 + $0x6] sm:$0x7] %vm132, %v333
    // Predicated region
    $region14: #{conv_transpose_tanh.1} parent=1 // pred_check
      _
    $region15: #{conv_transpose_tanh.1} parent=1 // pred_check_branch
      %337 = sbr.rel (0) target = $region17
    $region16: #{conv_transpose_tanh.1} parent=1 // pred_region
      _
    $region17: #{conv_transpose_tanh.1} parent=1 // pred_fallthru
      _
    // Predicated region
    $region18: #{conv_transpose_tanh.1} parent=1 // pred_check
      _
    $region19: #{conv_transpose_tanh.1} parent=1 // pred_check_branch
      %339 = sbr.rel (0) target = $region21
    $region20: #{conv_transpose_tanh.1} parent=1 // pred_region
      _
    $region21: #{conv_transpose_tanh.1} parent=1 // pred_fallthru
      _
    %340 = vsyncpa [#allocation3], 1

</llo_original>
